<compile_context>
chip_gen: v5e
topology: v5e:2x2
jax: 0.10.0
libtpu: 0.0.40
codegen_flags: <defaults>
</compile_context>

<pallas_src>
import jax
import jax.numpy as jnp
from jax.experimental import pallas as pl
from jax.experimental.pallas import tpu as pltpu

_LANE = 128


def _mish_kernel(x_ref, o_ref):
    x = x_ref[...].astype(jnp.float32)
    # tanh(softplus(x)) = e^x(e^x+2) / (e^x(e^x+2)+2); clamp keeps exp finite
    # (e^20 ~ 4.9e8, squared ~ 2.4e17 -- well within f32 range).
    e = jnp.exp(jnp.minimum(x, 20.0))
    num = e * (e + 2.0)
    t = num / (num + 2.0)
    # For x > 20, softplus(x) == x (torch threshold) and tanh(x) == 1 in f32.
    y = jnp.where(x > 20.0, x, x * t)
    o_ref[...] = y.astype(o_ref.dtype)


def _choose_row_tile(rows: int) -> int:
    """~512 KiB f32 blocks (1024x128), shrunk so the grid keeps >= 4 steps."""
    if rows <= 8:
        return max(rows, 1)  # full-array block
    rt = 1024
    while rt > 8 and pl.cdiv(rows, rt) < 4:
        rt //= 2
    return rt


def mish(x: jax.Array) -> jax.Array:
    """Elementwise Mish. Accepts any shape; hot path runs in a Pallas kernel."""
    orig_shape = x.shape
    orig_dtype = x.dtype

    flat = x.reshape(-1)
    n = flat.shape[0]

    # Only pad when the element count is not lane-aligned (rare for conv
    # activations); at most 127 extra elements, mish(0) == 0 so padding is safe.
    pad = (-n) % _LANE
    if pad:
        flat = jnp.concatenate([flat, jnp.zeros((pad,), dtype=orig_dtype)])
    rows = flat.shape[0] // _LANE
    x2d = flat.reshape(rows, _LANE)

    row_tile = _choose_row_tile(rows)
    grid = (pl.cdiv(rows, row_tile),)  # partial last block is masked by Pallas

    out2d = pl.pallas_call(
        _mish_kernel,
        out_shape=jax.ShapeDtypeStruct((rows, _LANE), orig_dtype),
        grid_spec=pltpu.PrefetchScalarGridSpec(
            num_scalar_prefetch=0,
            grid=grid,
            in_specs=[pl.BlockSpec((row_tile, _LANE), lambda i: (i, 0))],
            out_specs=pl.BlockSpec((row_tile, _LANE), lambda i: (i, 0)),
        ),
        compiler_params=pltpu.CompilerParams(
            dimension_semantics=("parallel",),
        ),
    )(x2d)

    out_flat = out2d.reshape(-1)
    if pad:
        out_flat = out_flat[:n]
    return out_flat.reshape(orig_shape)


def mish_ref(x):
    # Pure-JAX reference (log1p/exp/tanh form, matches torch.nn.functional.softplus
    # default beta=1, threshold=20).
    xf = x.astype(jnp.float32)
    sp = jnp.where(xf > 20.0, xf, jnp.log1p(jnp.exp(jnp.minimum(xf, 20.0))))
    return (xf * jnp.tanh(sp)).astype(x.dtype)


if __name__ == "__main__":
    key = jax.random.PRNGKey(0)

    # NCHW, consistent with PyTorch conv activations in VGG16 (lane-aligned case).
    x = jax.random.normal(key, (2, 4, 16, 16), dtype=jnp.float32) * 3.0
    y = mish(x)
    jax.block_until_ready(y)
    y_ref = mish_ref(x)
    assert y.shape == x.shape and y.dtype == x.dtype
    assert jnp.allclose(y, y_ref, atol=1e-5, rtol=1e-5)

    # Non-lane-aligned shape exercises the (rare) pad path + masked last block.
    x2 = jax.random.normal(jax.random.PRNGKey(1), (3, 5, 7, 11), dtype=jnp.float32) * 5.0
    y2 = mish(x2)
    jax.block_until_ready(y2)
    assert jnp.allclose(y2, mish_ref(x2), atol=1e-5, rtol=1e-5)

    print("KERNEL_OK")
</pallas_src>

<mosaic_0001>
module attributes {stable_mosaic.version = 11 : i64} {
  func.func @_mish_kernel(%arg0: i32, %arg1: memref<8x128xf32, #tpu.memory_space<vmem>>, %arg2: memref<8x128xf32, #tpu.memory_space<vmem>>) attributes {dimension_semantics = [#tpu.dimension_semantics<parallel>], iteration_bounds = array<i64: 2>, scalar_prefetch = 0 : i64, scratch_operands = 0 : i64, tpu.core_type = #tpu.core_type<tc>, window_params = [{transform_indices = @transform_0, window_bounds = array<i64: 8, 128>}, {transform_indices = @transform_1, window_bounds = array<i64: 8, 128>}]} {
    %c0 = arith.constant 0 : index
    %c0_0 = arith.constant 0 : index
    %0 = vector.load %arg1[%c0, %c0_0] : memref<8x128xf32, #tpu.memory_space<vmem>>, vector<8x128xf32>
    %cst = arith.constant 2.000000e+01 : f32
    %1 = vector.broadcast %cst : f32 to vector<8x128xf32>
    %2 = arith.minimumf %0, %1 : vector<8x128xf32>
    %3 = math.exp %2 : vector<8x128xf32>
    %cst_1 = arith.constant 2.000000e+00 : f32
    %4 = vector.broadcast %cst_1 : f32 to vector<8x128xf32>
    %5 = arith.addf %3, %4 : vector<8x128xf32>
    %6 = arith.mulf %3, %5 : vector<8x128xf32>
    %cst_2 = arith.constant 2.000000e+00 : f32
    %7 = vector.broadcast %cst_2 : f32 to vector<8x128xf32>
    %8 = arith.addf %6, %7 : vector<8x128xf32>
    %9 = arith.divf %6, %8 : vector<8x128xf32>
    %cst_3 = arith.constant 2.000000e+01 : f32
    %10 = vector.broadcast %cst_3 : f32 to vector<8x128xf32>
    %11 = arith.cmpf ogt, %0, %10 : vector<8x128xf32>
    %12 = arith.mulf %0, %9 : vector<8x128xf32>
    %13 = arith.select %11, %0, %12 : vector<8x128xi1>, vector<8x128xf32>
    %c0_4 = arith.constant 0 : index
    %c0_5 = arith.constant 0 : index
    %14 = vector.load %arg2[%c0_4, %c0_5] : memref<8x128xf32, #tpu.memory_space<vmem>>, vector<8x128xf32>
    tpu.vector_store %arg2[%c0_4, %c0_5], %13 {strides = array<i32>} : memref<8x128xf32, #tpu.memory_space<vmem>>, vector<8x128xf32>,
    return
  }
  func.func @transform_0(%arg0: i32) -> (i32, i32) {
    %c0_i32 = arith.constant 0 : i32
    %c0_i32_0 = arith.constant 0 : i32
    return %arg0, %c0_i32 : i32, i32
  }
  func.func @transform_1(%arg0: i32) -> (i32, i32) {
    %c0_i32 = arith.constant 0 : i32
    %c0_i32_0 = arith.constant 0 : i32
    return %arg0, %c0_i32 : i32, i32
  }
}

</mosaic_0001>

<llo_original>
// kernel: tpu_custom_call.1
$region0: #{tpu_custom_call.1}
  #allocation0 [shape = 'u32[]', space=smem, size = 0x4, offset = 0x4, fixed_abs, tag = 'smem constant byte address 0x4 - core index']
  #allocation1 [shape = 'u32[72,128]{1,0:T(1,128)}', space=vmem, size = 0x9000, scoped, tag = 'internal scratch']
  %s0 = inlined_call_operand.hbm [shape: f32[16,128], index: 0, kind: input, shape index: {}]
  %s1 = inlined_call_operand.hbm [shape: f32[16,128], index: 1, kind: output, shape index: {}]
  %s2 = sld [smem:[#allocation0]]
  $region41: #{tpu_custom_call.1} parent=0
    _
  %s4 = ssub.s32 1, %s2
  %s5 = scalar_select 0, %s4, %s2
  $region1: #{tpu_custom_call.1} parent=0
    #allocation2 [shape = 'u8[8192]{0}', space=vmem, size = 0x2000, scoped, tag = 'input window, operand 0']
    #allocation3 [shape = 's32[2]{0}', space=sflag, size = 0x8, scoped, tag = 'scoped memory for tpu_custom_call.1']
    #allocation4 [shape = 's32[2]{0}', space=sflag, size = 0x8, scoped, tag = 'scoped memory for tpu_custom_call.1']
    #allocation5 [shape = 'u8[8192]{0}', space=vmem, size = 0x2000, scoped, tag = 'output window, operand 0']
    %6 = vsyncpa [#allocation3], 0
    %s7 = scalar_lea.sflag [#allocation3], 1
    %8 = vsyncpa %s7, 0
    %9 = vsyncpa [#allocation4], 0
    %s10 = scalar_lea.sflag [#allocation4], 1
    %11 = vsyncpa %s10, 0
    loop: start=0, step=1, limit=4
    $region2: #{tpu_custom_call.1} parent=1 // loop_pre_header
      _
    $region3: #{tpu_custom_call.1} parent=1 // loop_header
      %s13 = sphi 0, %s17
      %p14 = scmp.ge.s32.totalorder %s13, 4
      %s23 = sphi 0, %s25
      %s26 = sphi 0, %s23
      %s27 = sphi 0, %s26
      %s43 = sphi 0, %s27
      %s49 = sphi 0, %s51
      %s52 = sphi 0, %s49
      %s53 = sphi 0, %s52
      %s69 = sphi 0, %s53
    $region4: #{tpu_custom_call.1} parent=1 // loop_header_branch
      %16 = sbr.rel (%p14) target = $region8
    $region5: #{tpu_custom_call.1} parent=1 // loop_body
      %s18 = ssub.s32 %s13, 1
      %s19 = ssub.s32 %s13, 2
      %s20 = sadd.s32 %s13, 1
      %s21 = ssub.s32 %s13, %s20
      %p22 = scmp.eq.s32.totalorder %s21, 0
      %s24 = sadd.s32 %s23, 1
      %s25 = scalar_select %p22, %s23, %s24
      %p28 = pneg %p22
      %p29 = scmp.eq.s32.totalorder %s13, 1
      %p30 = por %p28, %p29
      %p31 = scmp.ne.s32.totalorder %s23, %s26
      %p32 = scmp.eq.s32.totalorder %s13, 0
      %p33 = por %p31, %p32
      %p34 = scmp.ne.s32.totalorder %s23, %s26
      %p35 = scmp.eq.s32.totalorder %s18, 1
      %p36 = por %p34, %p35
      %p37 = scmp.ne.s32.totalorder %s26, %s27
      %p38 = scmp.eq.s32.totalorder %s18, 0
      %p39 = por %p37, %p38
      %p40 = scmp.ne.s32.totalorder %s26, %s27
      %p41 = scmp.eq.s32.totalorder %s19, 1
      %p42 = por %p40, %p41
      %p44 = scmp.ne.s32.totalorder %s27, %s43
      %p45 = scmp.eq.s32.totalorder %s19, 0
      %p46 = por %p44, %p45
      %s47 = ssub.s32 %s13, %s20
      %p48 = scmp.eq.s32.totalorder %s47, 0
      %s50 = sadd.s32 %s49, 1
      %s51 = scalar_select %p48, %s49, %s50
      %p54 = pneg %p48
      %p55 = scmp.eq.s32.totalorder %s13, 1
      %p56 = por %p54, %p55
      %p57 = scmp.ne.s32.totalorder %s49, %s52
      %p58 = scmp.eq.s32.totalorder %s13, 0
      %p59 = por %p57, %p58
      %p60 = scmp.ne.s32.totalorder %s49, %s52
      %p61 = scmp.eq.s32.totalorder %s18, 1
      %p62 = por %p60, %p61
      %p63 = scmp.ne.s32.totalorder %s52, %s53
      %p64 = scmp.eq.s32.totalorder %s18, 0
      %p65 = por %p63, %p64
      %p66 = scmp.ne.s32.totalorder %s52, %s53
      %p67 = scmp.eq.s32.totalorder %s19, 1
      %p68 = por %p66, %p67
      %p70 = scmp.ne.s32.totalorder %s53, %s69
      %p71 = scmp.eq.s32.totalorder %s19, 0
      %p72 = por %p70, %p71
      %p73 = scmp.le.s32.totalorder 1, %s13
      %p74 = scmp.lt.s32.totalorder %s13, 3
      %p75 = pnand %p73, %p74
      %p76 = pneg %p75
      // Predicated region
      $region9: #{tpu_custom_call.1} parent=5 // pred_check
        _
      $region10: #{tpu_custom_call.1} parent=5 // pred_check_branch
        %78 = sbr.rel (%p75) target = $region12
      $region11: #{tpu_custom_call.1} parent=5 // pred_region
        %s79 = ssub.s32 %s13, 1
      $region12: #{tpu_custom_call.1} parent=5 // pred_fallthru
        _
      %p80 = scmp.lt.s32.totalorder %s13, 2
      // Predicated region
      $region13: #{tpu_custom_call.1} parent=5 // pred_check
        %p81 = pneg %p80
      $region14: #{tpu_custom_call.1} parent=5 // pred_check_branch
        %83 = sbr.rel (%p81) target = $region16
      $region15: #{tpu_custom_call.1} parent=5 // pred_region
        // Predicated region
        $region17: #{tpu_custom_call.1} parent=15 // pred_check
          %p84 = pneg %p33
        $region18: #{tpu_custom_call.1} parent=15 // pred_check_branch
          %86 = sbr.rel (%p84) target = $region20
        $region19: #{tpu_custom_call.1} parent=15 // pred_region
          %s87 = sand.u32 %s23, 1
          %s88 = scalar_lea.sflag [#allocation3], %s87
          %s89 = sand.u32 %s23, 1
          %s90 = smul.addr %s89, 8
          %s91 = scalar_lea.vmem [#allocation2], %s90
          %93 = vsyncadd %s88, 0
          %s94 = smul.addr %s13, 8
          %s95 = scalar_lea.hbm %s0, %s94
          %s97 = sshll.u32 %s95, 4
          %s98 = int_to_ptr.hbm [resolvable:$true] %s97
          %s99 = sshll.u32 %s91, 4
          %s100 = int_to_ptr.vmem [resolvable:$true] %s99
          %102 = dma.hbm_to_vmem [thread:$0]  %s98, 128, %s100, %s88
        $region20: #{tpu_custom_call.1} parent=15 // pred_fallthru
          _
      $region16: #{tpu_custom_call.1} parent=5 // pred_fallthru
        _
      %p103 = scmp.le.s32.totalorder 1, %s13
      %p104 = scmp.lt.s32.totalorder %s13, 3
      %p105 = pnand %p103, %p104
      %p106 = pneg %p105
      // Predicated region
      $region21: #{tpu_custom_call.1} parent=5 // pred_check
        _
      $region22: #{tpu_custom_call.1} parent=5 // pred_check_branch
        %108 = sbr.rel (%p105) target = $region24
      $region23: #{tpu_custom_call.1} parent=5 // pred_region
        %s109 = ssub.s32 %s13, 1
        %s110 = sand.u32 %s26, 1
        %s111 = scalar_lea.sflag [#allocation3], %s110
        %s112 = sand.u32 %s26, 1
        %s113 = smul.addr %s112, 8
        %s114 = scalar_lea.vmem [#allocation2], %s113
        // Predicated region
        $region25: #{tpu_custom_call.1} parent=23 // pred_check
          %p115 = pneg %p39
        $region26: #{tpu_custom_call.1} parent=23 // pred_check_branch
          %117 = sbr.rel (%p115) target = $region28
        $region27: #{tpu_custom_call.1} parent=23 // pred_region
          %119 = dma.done %s111, 128
        $region28: #{tpu_custom_call.1} parent=23 // pred_fallthru
          _
        %s120 = sand.u32 %s26, 1
        %s121 = scalar_lea.sflag [#allocation3], %s120
        %s122 = sand.u32 %s26, 1
        %s123 = smul.addr %s122, 8
        %s124 = scalar_lea.vmem [#allocation2], %s123
        %p125 = pneg %p39
        %p126 = pneg %p36
        %p127 = pneg %p65
        %p128 = pneg %p62
        %s129 = sand.u32 %s52, 1
        %s130 = scalar_lea.sflag [#allocation4], %s129
        %s131 = sand.u32 %s52, 1
        %s132 = smul.addr %s131, 8
        %s133 = scalar_lea.vmem [#allocation5], %s132
        %v134 = vld [vmem:[%s114] sm:$0xff]
        %v135 = vmin.f32 %v134, 20.0
        %v136 = vmul.f32 %v135, 1.442695
        %v137 = vpow.pop %v136
        %v138 = vadd.f32 %v137, 2.0
        %v139 = vmul.f32 %v137, %v138
        %v140 = vadd.f32 %v139, 2.0
        %v141 = vrcp.pop %v140
        %v142 = vmul.f32 %v140, %v141
        %v143 = vsub.f32 1.0, %v142
        %v144 = vmul.f32 %v141, %v143
        %v145 = vadd.f32 %v141, %v144
        %vm146 = vweird.f32 %v140
        %vm147 = vweird.f32 %v141
        %vm148 = vmor %vm146, %vm147
        %v149 = vsel %vm148, %v141, %v145
        %v150 = vand.u32 2147483647, %v140
        %vm151 = vcmp.eq.f32.partialorder %v150, 8.507059e+37
        %v152 = vand.u32 %v140, 2147483648
        %v153 = vor.u32 1.1754944e-38, %v152
        %v154 = vsel %vm151, %v153, %v149
        %v155 = vmul.f32 %v139, %v154
        %vm156 = vcmp.gt.f32.partialorder %v134, 20.0
        %v157 = vmul.f32 %v134, %v155
        %v158 = vsel %vm156, %v134, %v157
        %159 = vst [vmem:[%s133] sm:$0xff] %v158
        %s160 = sand.u32 %s52, 1
        %s161 = scalar_lea.sflag [#allocation4], %s160
        %s162 = sand.u32 %s52, 1
        %s163 = smul.addr %s162, 8
        %s164 = scalar_lea.vmem [#allocation5], %s163
        // Predicated region
        $region29: #{tpu_custom_call.1} parent=23 // pred_check
          %p165 = pneg %p62
        $region30: #{tpu_custom_call.1} parent=23 // pred_check_branch
          %167 = sbr.rel (%p165) target = $region32
        $region31: #{tpu_custom_call.1} parent=23 // pred_region
          %169 = vsyncadd %s161, 0
          %s170 = smul.addr %s18, 8
          %s171 = scalar_lea.hbm %s1, %s170
          %s173 = sshll.u32 %s164, 4
          %s174 = int_to_ptr.vmem [resolvable:$true] %s173
          %s175 = sshll.u32 %s171, 4
          %s176 = int_to_ptr.hbm [resolvable:$true] %s175
          %178 = dma.vmem_to_hbm [thread:$0]  %s174, 128, %s176, %s161
        $region32: #{tpu_custom_call.1} parent=23 // pred_fallthru
          _
      $region24: #{tpu_custom_call.1} parent=5 // pred_fallthru
        _
      %p179 = scmp.le.s32.totalorder 2, %s13
      // Predicated region
      $region33: #{tpu_custom_call.1} parent=5 // pred_check
        %p180 = pneg %p179
      $region34: #{tpu_custom_call.1} parent=5 // pred_check_branch
        %182 = sbr.rel (%p180) target = $region36
      $region35: #{tpu_custom_call.1} parent=5 // pred_region
        %s183 = ssub.s32 %s13, 2
        // Predicated region
        $region37: #{tpu_custom_call.1} parent=35 // pred_check
          %p184 = pneg %p68
        $region38: #{tpu_custom_call.1} parent=35 // pred_check_branch
          %186 = sbr.rel (%p184) target = $region40
        $region39: #{tpu_custom_call.1} parent=35 // pred_region
          %s187 = sand.u32 %s53, 1
          %s188 = scalar_lea.sflag [#allocation4], %s187
          %s189 = sand.u32 %s53, 1
          %s190 = smul.addr %s189, 8
          %s191 = scalar_lea.vmem [#allocation5], %s190
          %193 = dma.done %s188, 128
        $region40: #{tpu_custom_call.1} parent=35 // pred_fallthru
          _
      $region36: #{tpu_custom_call.1} parent=5 // pred_fallthru
        _
    $region6: #{tpu_custom_call.1} parent=1 // loop_footer
      %s17 = sadd.s32 1, %s13
    $region7: #{tpu_custom_call.1} parent=1 // loop_footer_branch
      %12 = sbr.rel target = $region3
    $region8: #{tpu_custom_call.1} parent=1 // loop_exit
      _
    %194 = vsyncpa [#allocation3], 1
    %s195 = scalar_lea.sflag [#allocation3], 1
    %196 = vsyncpa %s195, 1
    %197 = vsyncpa [#allocation4], 1
    %s198 = scalar_lea.sflag [#allocation4], 1
    %199 = vsyncpa %s198, 1

</llo_original>
